<compile_context>
chip_gen: v6e
topology: v6e:2x2x1
jax: 0.10.0
libtpu: 0.0.40
codegen_flags: <defaults>
</compile_context>

<pallas_src>
import functools

import jax
import jax.numpy as jnp
from jax.experimental import pallas as pl
from jax.experimental.pallas import tpu as pltpu


# ------------------------------ kernels ------------------------------------ #

def _pe_add_kernel(x_ref, p_ref, o_ref):
    """out = x + P  (eval mode / p == 0)."""
    o_ref[...] = (x_ref[...] + p_ref[...]).astype(o_ref.dtype)


def _pe_add_dropout_kernel(x_ref, p_ref, bits_ref, o_ref, *, threshold, scale):
    """out = inverted_dropout(x + P): keep if bits >= threshold, scale by 1/(1-p)."""
    y = x_ref[...] + p_ref[...]
    keep = bits_ref[...] >= jnp.uint32(threshold)
    o_ref[...] = jnp.where(keep, y * jnp.asarray(scale, y.dtype),
                           jnp.zeros_like(y)).astype(o_ref.dtype)


# ------------------------------ wrapper ------------------------------------ #

def make_positional_table(num_hiddens, max_len=150, dtype=jnp.float32):
    """P of shape (1, max_len, num_hiddens), identical to the torch __init__."""
    pos = jnp.arange(max_len, dtype=jnp.float32)[:, None]                     # (L, 1)
    div = jnp.power(
        10000.0, jnp.arange(0, num_hiddens, 2, dtype=jnp.float32) / num_hiddens
    )                                                                          # (H/2,)
    angle = pos / div                                                          # (L, H/2)
    # interleave sin/cos -> even cols = sin, odd cols = cos
    P = jnp.stack([jnp.sin(angle), jnp.cos(angle)], axis=-1).reshape(
        max_len, num_hiddens)
    return P.astype(dtype)[None, :, :]


def _choose_tiles(n_rows, n_lanes, itemsize, target_bytes=1 << 20, max_lanes=8192):
    """Pick (row_tile, lane_tile) obeying the (8, 128) block constraints and a
    ~1 MiB per-stream block budget (safe for double buffering on v5e/v6e/v7x)."""
    if n_lanes % 128 == 0:
        lane_tile = min(n_lanes, max_lanes)
    else:
        lane_tile = n_lanes  # full last dim is always a legal block shape
    rows_target = max(1, target_bytes // max(1, lane_tile * itemsize))
    if n_rows <= rows_target or n_rows <= 8:
        row_tile = n_rows    # full dim is always legal
    else:
        row_tile = max(8, (min(rows_target, n_rows) // 8) * 8)
    return row_tile, lane_tile


def positional_encoding(x, P, *, dropout_p=0.1, training=False, key=None):
    """x: (B, S, H). Returns x + P[:, :S, :] with (optional) inverted dropout."""
    B, S, H = x.shape
    assert S <= P.shape[1], f"seq_len {S} exceeds max_len {P.shape[1]}"

    if training and dropout_p >= 1.0:
        return jnp.zeros_like(x)

    L = S * H
    x2 = x.reshape(B, L)
    p2 = P[0, :S, :].reshape(1, L).astype(x.dtype)

    row_tile, lane_tile = _choose_tiles(B, L, jnp.dtype(x.dtype).itemsize)
    # Lane axis OUTER, batch axis INNER -> P's block index changes only on the
    # outer axis and is not re-fetched per batch tile.
    grid = (pl.cdiv(L, lane_tile), pl.cdiv(B, row_tile))

    row_spec = pl.BlockSpec((row_tile, lane_tile), lambda l, b: (b, l))
    p_spec = pl.BlockSpec((1, lane_tile), lambda l, b: (0, l))
    out_shape = jax.ShapeDtypeStruct((B, L), x.dtype)
    cparams = pltpu.CompilerParams(
        dimension_semantics=("parallel", "parallel"))  # order-independent

    apply_dropout = bool(training) and float(dropout_p) > 0.0
    if apply_dropout:
        if key is None:
            key = jax.random.PRNGKey(0)
        bits = jax.random.bits(key, (B, L), dtype=jnp.uint32)
        threshold = min(int(round(float(dropout_p) * 2.0 ** 32)), 2 ** 32 - 1)
        scale = 1.0 / (1.0 - float(dropout_p))
        kernel = functools.partial(
            _pe_add_dropout_kernel, threshold=threshold, scale=scale)
        out2 = pl.pallas_call(
            kernel,
            out_shape=out_shape,
            grid=grid,
            in_specs=[row_spec, p_spec, row_spec],
            out_specs=row_spec,
            compiler_params=cparams,
        )(x2, p2, bits)
    else:
        out2 = pl.pallas_call(
            _pe_add_kernel,
            out_shape=out_shape,
            grid=grid,
            in_specs=[row_spec, p_spec],
            out_specs=row_spec,
            compiler_params=cparams,
        )(x2, p2)

    return out2.reshape(B, S, H)


# ------------------------------ test ---------------------------------------- #

if __name__ == "__main__":
    # Small shapes consistent with the module: batch=2, seq=8, num_hiddens=32.
    B, S, H = 2, 8, 32
    max_len = 150
    dropout = 0.1

    key = jax.random.PRNGKey(0)
    k_x, k_drop = jax.random.split(key)
    x = jax.random.normal(k_x, (B, S, H), dtype=jnp.float32)

    P = make_positional_table(H, max_len=max_len)

    # Eval mode (dropout is identity) -- deterministic reference check.
    out_eval = positional_encoding(x, P, dropout_p=dropout, training=False)
    out_eval = jax.block_until_ready(out_eval)
    ref = x + P[:, :S, :]
    assert jnp.allclose(out_eval, ref, atol=1e-6), "eval-mode mismatch"

    # Train mode (inverted dropout applied inside the kernel).
    out_train = positional_encoding(
        x, P, dropout_p=dropout, training=True, key=k_drop)
    out_train = jax.block_until_ready(out_train)
    assert out_train.shape == (B, S, H)
    # Every surviving element must equal (x + P) / (1 - p); dropped ones are 0.
    scaled = ref / (1.0 - dropout)
    kept = out_train != 0
    assert jnp.allclose(jnp.where(kept, out_train, 0.0),
                        jnp.where(kept, scaled, 0.0), atol=1e-5), \
        "train-mode surviving values mismatch"

    print("KERNEL_OK")
</pallas_src>

<mosaic_0001>
module attributes {stable_mosaic.version = 11 : i64} {
  func.func @_pe_add_kernel(%arg0: i32, %arg1: i32, %arg2: memref<2x256xf32, #tpu.memory_space<vmem>>, %arg3: memref<1x256xf32, #tpu.memory_space<vmem>>, %arg4: memref<2x256xf32, #tpu.memory_space<vmem>>) attributes {dimension_semantics = [#tpu.dimension_semantics<parallel>, #tpu.dimension_semantics<parallel>], iteration_bounds = array<i64: 1, 1>, scalar_prefetch = 0 : i64, scratch_operands = 0 : i64, tpu.core_type = #tpu.core_type<tc>, window_params = [{transform_indices = @transform_0, window_bounds = array<i64: 2, 256>}, {transform_indices = @transform_1, window_bounds = array<i64: 1, 256>}, {transform_indices = @transform_2, window_bounds = array<i64: 2, 256>}]} {
    %c0 = arith.constant 0 : index
    %c0_0 = arith.constant 0 : index
    %0 = vector.load %arg2[%c0, %c0_0] : memref<2x256xf32, #tpu.memory_space<vmem>>, vector<2x256xf32>
    %c0_1 = arith.constant 0 : index
    %c0_2 = arith.constant 0 : index
    %1 = vector.load %arg3[%c0_1, %c0_2] : memref<1x256xf32, #tpu.memory_space<vmem>>, vector<1x256xf32>
    %2 = vector.broadcast %1 : vector<1x256xf32> to vector<2x256xf32>
    %3 = arith.addf %0, %2 : vector<2x256xf32>
    %c0_3 = arith.constant 0 : index
    %c0_4 = arith.constant 0 : index
    %4 = vector.load %arg4[%c0_3, %c0_4] : memref<2x256xf32, #tpu.memory_space<vmem>>, vector<2x256xf32>
    tpu.vector_store %arg4[%c0_3, %c0_4], %3 {strides = array<i32>} : memref<2x256xf32, #tpu.memory_space<vmem>>, vector<2x256xf32>,
    return
  }
  func.func @transform_0(%arg0: i32, %arg1: i32) -> (i32, i32) {
    %c0_i32 = arith.constant 0 : i32
    return %arg1, %arg0 : i32, i32
  }
  func.func @transform_1(%arg0: i32, %arg1: i32) -> (i32, i32) {
    %c0_i32 = arith.constant 0 : i32
    %c0_i32_0 = arith.constant 0 : i32
    return %c0_i32, %arg0 : i32, i32
  }
  func.func @transform_2(%arg0: i32, %arg1: i32) -> (i32, i32) {
    %c0_i32 = arith.constant 0 : i32
    return %arg1, %arg0 : i32, i32
  }
}

</mosaic_0001>

<llo_original>
// kernel: tpu_custom_call.1
$region0: #{tpu_custom_call.1}
  #allocation0 [shape = 'u32[]', space=smem, size = 0x4, offset = 0x4, fixed_abs, tag = 'smem constant byte address 0x4 - core index']
  #allocation1 [shape = 'u32[144,128]{1,0:T(1,128)}', space=vmem, size = 0x12000, scoped, tag = 'internal scratch']
  %s0 = inlined_call_operand.hbm [shape: f32[2,256], index: 0, kind: input, shape index: {}]
  %s1 = inlined_call_operand.hbm [shape: f32[1,256], index: 1, kind: input, shape index: {}]
  %s2 = inlined_call_operand.hbm [shape: f32[2,256], index: 2, kind: output, shape index: {}]
  %s3 = sld [smem:[#allocation0]]
  $region26: #{tpu_custom_call.1} parent=0
    _
  %s5 = ssub.s32 1, %s3
  %s6 = scalar_select 0, %s5, %s3
  $region1: #{tpu_custom_call.1} parent=0
    #allocation2 [shape = 'u8[2048]{0}', space=vmem, size = 0x800, scoped, tag = 'input window, operand 0, single buffered']
    #allocation3 [shape = 's32[1]{0}', space=sflag, size = 0x4, scoped, tag = 'scoped memory for tpu_custom_call.1']
    #allocation4 [shape = 's32[1]{0}', space=sflag, size = 0x4, scoped, tag = 'scoped memory for tpu_custom_call.1']
    #allocation5 [shape = 'u8[1024]{0}', space=vmem, size = 0x400, scoped, tag = 'input window, operand 1, single buffered']
    #allocation6 [shape = 's32[1]{0}', space=sflag, size = 0x4, scoped, tag = 'scoped memory for tpu_custom_call.1']
    #allocation7 [shape = 'u8[2048]{0}', space=vmem, size = 0x800, scoped, tag = 'output window, operand 0, single buffered']
    %7 = vsyncpa [#allocation3], 0
    %8 = vsyncpa [#allocation6], 0
    %9 = vsyncpa [#allocation4], 0
    // Predicated region
    $region2: #{tpu_custom_call.1} parent=1 // pred_check
      _
    $region3: #{tpu_custom_call.1} parent=1 // pred_check_branch
      %11 = sbr.rel (0) target = $region5
    $region4: #{tpu_custom_call.1} parent=1 // pred_region
      %s13 = ssub.s32 64, 64
      %14 = vsyncadd [#allocation3], %s13
      %s16 = sshll.u32 [#allocation2], 4
      %s17 = int_to_ptr.vmem [resolvable:$true] %s16
      %19 = dma.hbm_to_vmem [thread:$0]  %s0, 64, %s17, [#allocation3]
    $region5: #{tpu_custom_call.1} parent=1 // pred_fallthru
      _
    // Predicated region
    $region6: #{tpu_custom_call.1} parent=1 // pred_check
      _
    $region7: #{tpu_custom_call.1} parent=1 // pred_check_branch
      %21 = sbr.rel (0) target = $region9
    $region8: #{tpu_custom_call.1} parent=1 // pred_region
      %s23 = ssub.s32 32, 32
      %24 = vsyncadd [#allocation6], %s23
      %s26 = sshll.u32 [#allocation5], 4
      %s27 = int_to_ptr.vmem [resolvable:$true] %s26
      %29 = dma.hbm_to_vmem [thread:$0]  %s1, 32, %s27, [#allocation6]
    $region9: #{tpu_custom_call.1} parent=1 // pred_fallthru
      _
    // Predicated region
    $region10: #{tpu_custom_call.1} parent=1 // pred_check
      _
    $region11: #{tpu_custom_call.1} parent=1 // pred_check_branch
      %31 = sbr.rel (0) target = $region13
    $region12: #{tpu_custom_call.1} parent=1 // pred_region
      %32 = dma.done [#allocation3], 64
    $region13: #{tpu_custom_call.1} parent=1 // pred_fallthru
      _
    // Predicated region
    $region14: #{tpu_custom_call.1} parent=1 // pred_check
      _
    $region15: #{tpu_custom_call.1} parent=1 // pred_check_branch
      %34 = sbr.rel (0) target = $region17
    $region16: #{tpu_custom_call.1} parent=1 // pred_region
      %35 = dma.done [#allocation6], 32
    $region17: #{tpu_custom_call.1} parent=1 // pred_fallthru
      _
    %v36 = vld [vmem:[#allocation2] sm:$0xf]
    %v37 = vld [vmem:[#allocation5] sm:$0x3]
    %v39 = vlaneseq
    %v40 = vshrl.u32 %v39, 7
    %v41 = vsub.s32 0, %v40
    %v42 = vrot.slane %v37, %v41
    %v43 = vlaneseq
    %v44 = vshrl.u32 %v43, 7
    %v45 = vsub.s32 1, %v44
    %v46 = vrot.slane %v37, %v45
    %v47 = vcombine.low %v42, %v46
    %v49 = vunpack.c.l.s4 1983009808
    %v50 = vunpack.c.0.s8 %v49
    %v51 = vlaneseq
    %v52 = vshrl.u32 %v51, 7
    %v53 = vsub.s32 %v50, %v52
    %v54 = vrot.slane %v47, %v53
    %v56 = vadd.f32 %v36, %v54
    %57 = vst [vmem:[#allocation7] sm:$0xf] %v56
    // Predicated region
    $region18: #{tpu_custom_call.1} parent=1 // pred_check
      _
    $region19: #{tpu_custom_call.1} parent=1 // pred_check_branch
      %59 = sbr.rel (0) target = $region21
    $region20: #{tpu_custom_call.1} parent=1 // pred_region
      %s61 = ssub.s32 64, 64
      %62 = vsyncadd [#allocation4], %s61
      %s64 = sshll.u32 [#allocation7], 4
      %s65 = int_to_ptr.vmem [resolvable:$true] %s64
      %67 = dma.vmem_to_hbm [thread:$0]  %s65, 64, %s2, [#allocation4]
    $region21: #{tpu_custom_call.1} parent=1 // pred_fallthru
      _
    // Predicated region
    $region22: #{tpu_custom_call.1} parent=1 // pred_check
      _
    $region23: #{tpu_custom_call.1} parent=1 // pred_check_branch
      %69 = sbr.rel (0) target = $region25
    $region24: #{tpu_custom_call.1} parent=1 // pred_region
      %70 = dma.done [#allocation4], 64
    $region25: #{tpu_custom_call.1} parent=1 // pred_fallthru
      _
    %71 = vsyncpa [#allocation3], 1
    %72 = vsyncpa [#allocation6], 1
    %73 = vsyncpa [#allocation4], 1

</llo_original>
